<compile_context>
chip_gen: v7x
topology: tpu7x:2x2x1
jax: 0.10.0
libtpu: 0.0.40
codegen_flags: <defaults>
</compile_context>

<pallas_src>
import jax
import jax.numpy as jnp
from jax.experimental import pallas as pl
from jax.experimental.pallas import tpu as pltpu

LANE = 128            # lane width of the params slab / hidden-1 activations
H1, H2, OUT = 20, 10, 1   # fixed layer widths of the BNN module
OUTP = 8              # output rows padded to one sublane group
MAX_TILE_B = 2048     # max batch rows per grid step (VMEM headroom on v7x)


def _round_up(n, m):
    return (n + m - 1) // m * m


def _cdiv(a, b):
    return -(-a // b)


# ---------------------------------------------------------------------------
# Hardware-aware batch tiling (grid == number of TensorCores when possible)
# ---------------------------------------------------------------------------
_NUM_TENSORCORES = None


def _guess_num_tensorcores():
    """Best-effort TensorCores per device (v7x: 2; v5e/v6e: 1). Falls back to 1."""
    try:
        info = pltpu.get_tpu_info()
        for name in ("num_tensorcores", "tensorcore_count", "num_cores", "core_count"):
            v = getattr(info, name, None)
            if v is not None:
                v = int(v)
                if 0 < v <= 8:
                    return min(v, 4)
    except Exception:
        pass
    try:
        v = getattr(jax.devices()[0], "num_cores", None)
        if v is not None:
            v = int(v)
            if 0 < v <= 8:
                return min(v, 4)
    except Exception:
        pass
    return 1


def _num_tensorcores():
    global _NUM_TENSORCORES
    if _NUM_TENSORCORES is None:
        _NUM_TENSORCORES = _guess_num_tensorcores()
    return _NUM_TENSORCORES


def _choose_tiling(batch):
    """One 128-row-aligned batch tile per TensorCore, unless MAX_TILE_B forces more."""
    n_cores = _num_tensorcores()
    b128 = _round_up(max(batch, 1), LANE)
    tiles = max(n_cores, _cdiv(b128, MAX_TILE_B))
    tiles = min(tiles, b128 // LANE)                 # keep tile_b a multiple of 128
    tile_b = _round_up(_cdiv(batch, tiles), LANE)
    return tiles, tile_b


# ---------------------------------------------------------------------------
# Pallas kernel: fused 3-layer MLP  relu(l1) -> relu(l2) -> tanh(l3)
#
# Packed parameter slab layout ((d_pad + 144) rows x 128 lanes, f32,
# every block start 8-row aligned):
#   rows [0, d_pad)          : W1^T            (real (input_size, 20))
#   rows [d_pad, d_pad+8)    : b1 row          (lanes 0..19 = b1, lane 20 = 1.0)
#   rows [o_w2, o_w2+128)    : W2 block        rows 0..9 lanes 0..19 = W2,
#                                              lane 20 = b2, row 10/lane 20 = 1.0
#   rows [o_w3, o_w3+8)      : W3 block        row 0 lanes 0..9 = W3, lane 10 = b3
# The 1.0 entries act as a homogeneous coordinate: h1[:, 20] == 1 and
# h2t[10, :] == 1, so the layer-2/3 biases ride inside the matmuls.
# ---------------------------------------------------------------------------
def make_bnn_kernel(d_pad):
    o_w1, o_b1 = 0, d_pad
    o_w2, o_w3 = d_pad + 8, d_pad + 8 + LANE

    def kernel(x_ref, p_ref, o_ref):
        x = x_ref[...]                               # (tile_b, d_pad)
        w1t = p_ref[o_w1:o_w1 + d_pad, :]            # (d_pad, 128)
        b1 = p_ref[o_b1:o_b1 + 1, :]                 # (1, 128), lane 20 == 1.0
        w2 = p_ref[o_w2:o_w2 + LANE, :]              # (128, 128), b2 folded in lane 20
        w3 = p_ref[o_w3:o_w3 + OUTP, :]              # (8, 128),   b3 folded in lane 10

        # layer 1, batch-major: lanes >= 21 stay exactly 0 (relu(0 + 0) == 0).
        h1 = jnp.maximum(
            jnp.dot(x, w1t, preferred_element_type=jnp.float32) + b1, 0.0)
        # One aligned XLU transpose puts the batch into lanes for the rest.
        h1t = h1.T                                   # (128, tile_b)
        # layers 2 + 3, batch-in-lanes; biases arrive via the ones lane/row.
        h2t = jnp.maximum(
            jnp.dot(w2, h1t, preferred_element_type=jnp.float32), 0.0)   # (128, tile_b)
        h3t = jnp.tanh(
            jnp.dot(w3, h2t, preferred_element_type=jnp.float32))        # (8, tile_b)
        o_ref[...] = h3t.astype(o_ref.dtype)         # lane-dense (8, tile_b) writeback

    return kernel


def bnn_forward_pallas(x_pad, params_slab, *, tile_b):
    """x_pad: (B_pad, d_pad) f32, B_pad % tile_b == 0; params_slab: (R, 128) f32."""
    B_pad, d_pad = x_pad.shape
    n_rows = params_slab.shape[0]
    return pl.pallas_call(
        make_bnn_kernel(d_pad),
        out_shape=jax.ShapeDtypeStruct((OUTP, B_pad), jnp.float32),
        grid_spec=pltpu.PrefetchScalarGridSpec(
            num_scalar_prefetch=0,
            grid=(B_pad // tile_b,),
            in_specs=[
                pl.BlockSpec((tile_b, d_pad), lambda i: (i, 0)),   # x tile
                # Constant index_map: params stay VMEM-resident; Pallas only
                # re-DMAs when the block index changes (it never does).
                pl.BlockSpec((n_rows, LANE), lambda i: (0, 0)),
            ],
            out_specs=pl.BlockSpec((OUTP, tile_b), lambda i: (0, i)),
        ),
        compiler_params=pltpu.CompilerParams(
            dimension_semantics=("parallel",)),
    )(x_pad, params_slab)


# ---------------------------------------------------------------------------
# Parameter setup (mirrors BayesianLinear.__init__ shapes & init ranges)
# ---------------------------------------------------------------------------
def init_bayesian_linear(key, in_features, out_features):
    k_wmu, k_wrho, k_bmu, k_brho = jax.random.split(key, 4)
    return dict(
        weight_mu=jax.random.uniform(k_wmu, (out_features, in_features),
                                     jnp.float32, -0.2, 0.2),
        weight_rho=jax.random.uniform(k_wrho, (out_features, in_features),
                                      jnp.float32, -5.0, -4.0),
        bias_mu=jax.random.uniform(k_bmu, (out_features,), jnp.float32, -0.2, 0.2),
        bias_rho=jax.random.uniform(k_brho, (out_features,), jnp.float32, -5.0, -4.0),
    )


def realize_layer(params, key, sample):
    """Gaussian.sample (reparameterization) or mu, per BayesianLinear.forward."""
    if sample:
        k_w, k_b = jax.random.split(key)
        w_sigma = jnp.log1p(jnp.exp(params["weight_rho"]))
        b_sigma = jnp.log1p(jnp.exp(params["bias_rho"]))
        w = params["weight_mu"] + w_sigma * jax.random.normal(
            k_w, params["weight_mu"].shape, jnp.float32)
        b = params["bias_mu"] + b_sigma * jax.random.normal(
            k_b, params["bias_mu"].shape, jnp.float32)
        return w, b
    return params["weight_mu"], params["bias_mu"]
    # TODO(synk): log_prior / log_variational_posterior (ScaleMixtureGaussian /
    # Gaussian log_prob scalar reductions used only by sample_elbo's training
    # loss) are not part of the forward output and are not implemented here.
    # TODO(synk): for MC-ELBO (many sampled weight sets) the reparameterization
    # could be fused in-kernel with pltpu.prng_seed / pltpu.stateful_normal and
    # a grid axis over samples; kept in plain JAX here.


def pack_params(layers, input_size):
    """Pack all three layers' (W, b) into one lane-dense (R, 128) f32 slab."""
    (w1, b1), (w2, b2), (w3, b3) = layers          # weights in torch (out, in) layout
    d_pad = _round_up(max(input_size, 8), 8)
    o_w1, o_b1 = 0, d_pad
    o_w2, o_w3 = d_pad + 8, d_pad + 8 + LANE
    n_rows = o_w3 + OUTP

    slab = jnp.zeros((n_rows, LANE), jnp.float32)
    # layer 1 (batch-major):  h1 = relu(x @ W1^T + b1)
    slab = slab.at[o_w1:o_w1 + input_size, :H1].set(w1.astype(jnp.float32).T)
    slab = slab.at[o_b1, :H1].set(b1.astype(jnp.float32))
    slab = slab.at[o_b1, H1].set(1.0)                      # ones lane: h1[:, 20] == 1
    # layer 2 (batch-in-lanes): h2t = relu(W2blk @ h1^T), bias in lane 20
    slab = slab.at[o_w2:o_w2 + H2, :H1].set(w2.astype(jnp.float32))
    slab = slab.at[o_w2:o_w2 + H2, H1].set(b2.astype(jnp.float32))
    slab = slab.at[o_w2 + H2, H1].set(1.0)                 # propagate ones: h2t[10] == 1
    # layer 3: h3t = tanh(W3blk @ h2t), bias in lane 10
    slab = slab.at[o_w3:o_w3 + OUT, :H2].set(w3.astype(jnp.float32))
    slab = slab.at[o_w3:o_w3 + OUT, H2].set(b3.astype(jnp.float32))
    return slab, d_pad


def realize_and_pack(params_l1, params_l2, params_l3, *, sample=False, key=None):
    """Build the packed params slab once per weight realization (hoisted out of
    the per-forward hot path)."""
    if sample:
        if key is None:
            raise ValueError("sample=True requires an explicit PRNG key")
        k1, k2, k3 = jax.random.split(key, 3)
    else:
        k1 = k2 = k3 = None
    layers = [realize_layer(params_l1, k1, sample),
              realize_layer(params_l2, k2, sample),
              realize_layer(params_l3, k3, sample)]
    slab, _ = pack_params(layers, params_l1["weight_mu"].shape[1])
    return slab


# ---------------------------------------------------------------------------
# Jitted hot path
# ---------------------------------------------------------------------------
@jax.jit
def _bnn_apply(x2d, slab):
    B, input_size = x2d.shape
    d_pad = slab.shape[0] - (8 + LANE + OUTP)      # d_pad baked into the slab layout
    if input_size > d_pad or d_pad % 8 != 0:
        raise ValueError("params slab does not match the input feature size")

    tiles, tile_b = _choose_tiling(B)
    B_pad = tiles * tile_b
    if (B_pad, d_pad) != (B, input_size):
        x_in = jnp.zeros((B_pad, d_pad), jnp.float32).at[:B, :input_size].set(x2d)
    else:
        x_in = x2d                                  # aligned: no pad/copy op at all

    out = bnn_forward_pallas(x_in, slab, tile_b=tile_b)   # (8, B_pad)
    return out[:OUT, :B].T                                # (B, 1)


def bnn_forward_packed(x, slab, *, input_size=None):
    if input_size is None:
        input_size = x.shape[-1]
    x2d = x.reshape(-1, input_size).astype(jnp.float32)   # x.view(-1, input_size)
    return _bnn_apply(x2d, slab)


def bnn_forward(x, params_l1, params_l2, params_l3, *, sample=False, key=None):
    slab = realize_and_pack(params_l1, params_l2, params_l3, sample=sample, key=key)
    return bnn_forward_packed(x, slab, input_size=params_l1["weight_mu"].shape[1])


# ---------------------------------------------------------------------------
if __name__ == "__main__":
    INPUTS = 16      # BNN(inputs=16)
    BATCH = 512      # one tile on single-TC chips, two 256-row tiles on v7x

    root = jax.random.PRNGKey(0)
    k_x, k_l1, k_l2, k_l3 = jax.random.split(root, 4)

    params_l1 = init_bayesian_linear(k_l1, INPUTS, 20)
    params_l2 = init_bayesian_linear(k_l2, 20, 10)
    params_l3 = init_bayesian_linear(k_l3, 10, 1)

    x = jax.random.normal(k_x, (BATCH, INPUTS), jnp.float32)

    # eval-mode: pack once, reuse the slab across forward calls (hoists the
    # wrapper-side packing out of the hot path).
    slab_eval = realize_and_pack(params_l1, params_l2, params_l3, sample=False)
    out = jax.block_until_ready(bnn_forward_packed(x, slab_eval))

    # sampled (reparameterized) path exercises the same kernel with a fresh slab.
    out_s = jax.block_until_ready(
        bnn_forward(x, params_l1, params_l2, params_l3, sample=True,
                    key=jax.random.PRNGKey(7)))

    # pure-JAX reference check (eval-mode path is deterministic)
    def ref(x, p1, p2, p3):
        h = jnp.maximum(x @ p1["weight_mu"].T + p1["bias_mu"], 0.0)
        h = jnp.maximum(h @ p2["weight_mu"].T + p2["bias_mu"], 0.0)
        return jnp.tanh(h @ p3["weight_mu"].T + p3["bias_mu"])

    expected = ref(x, params_l1, params_l2, params_l3)
    assert out.shape == (BATCH, 1), out.shape
    assert out_s.shape == (BATCH, 1), out_s.shape
    assert jnp.allclose(out, expected, atol=1e-5, rtol=1e-5), \
        float(jnp.max(jnp.abs(out - expected)))

    print("KERNEL_OK")
</pallas_src>

<mosaic_0001>
module attributes {stable_mosaic.version = 11 : i64} {
  func.func @kernel(%arg0: i32, %arg1: memref<512x16xf32, #tpu.memory_space<vmem>>, %arg2: memref<160x128xf32, #tpu.memory_space<vmem>>, %arg3: memref<8x512xf32, #tpu.memory_space<vmem>>) attributes {dimension_semantics = [#tpu.dimension_semantics<parallel>], iteration_bounds = array<i64: 1>, scalar_prefetch = 0 : i64, scratch_operands = 0 : i64, tpu.core_type = #tpu.core_type<tc>, window_params = [{transform_indices = @transform_0, window_bounds = array<i64: 512, 16>}, {pipeline_mode = #tpu.pipeline_mode<synchronous>, transform_indices = @transform_1, window_bounds = array<i64: 160, 128>}, {transform_indices = @transform_2, window_bounds = array<i64: 8, 512>}]} {
    %c0 = arith.constant 0 : index
    %c0_0 = arith.constant 0 : index
    %0 = vector.load %arg1[%c0, %c0_0] : memref<512x16xf32, #tpu.memory_space<vmem>>, vector<512x16xf32>
    %c0_1 = arith.constant 0 : index
    %c0_2 = arith.constant 0 : index
    %1 = vector.load %arg2[%c0_1, %c0_2] : memref<160x128xf32, #tpu.memory_space<vmem>>, vector<16x128xf32>
    %c16 = arith.constant 16 : index
    %c0_3 = arith.constant 0 : index
    %2 = vector.load %arg2[%c16, %c0_3] : memref<160x128xf32, #tpu.memory_space<vmem>>, vector<1x128xf32>
    %c24 = arith.constant 24 : index
    %c0_4 = arith.constant 0 : index
    %3 = vector.load %arg2[%c24, %c0_4] : memref<160x128xf32, #tpu.memory_space<vmem>>, vector<128x128xf32>
    %c152 = arith.constant 152 : index
    %c0_5 = arith.constant 0 : index
    %4 = vector.load %arg2[%c152, %c0_5] : memref<160x128xf32, #tpu.memory_space<vmem>>, vector<8x128xf32>
    %cst = arith.constant dense<0.000000e+00> : vector<512x128xf32>
    %5 = tpu.matmul %0, %1, %cst {dimension_numbers = #tpu.dot_dimension_numbers<[1], [0], [0], [1], [0, 0, 1, 1], [], []>} : vector<512x16xf32>, vector<16x128xf32>, vector<512x128xf32> -> vector<512x128xf32>
    %6 = vector.broadcast %2 : vector<1x128xf32> to vector<512x128xf32>
    %7 = arith.addf %5, %6 : vector<512x128xf32>
    %cst_6 = arith.constant 0.000000e+00 : f32
    %8 = vector.broadcast %cst_6 : f32 to vector<512x128xf32>
    %9 = arith.maximumf %7, %8 : vector<512x128xf32>
    %10 = tpu.transpose %9, [1, 0] : vector<512x128xf32> -> vector<128x512xf32>
    %cst_7 = arith.constant dense<0.000000e+00> : vector<128x512xf32>
    %11 = tpu.matmul %3, %10, %cst_7 {dimension_numbers = #tpu.dot_dimension_numbers<[1], [0], [0], [1], [0, 0, 1, 1], [], []>} : vector<128x128xf32>, vector<128x512xf32>, vector<128x512xf32> -> vector<128x512xf32>
    %cst_8 = arith.constant 0.000000e+00 : f32
    %12 = vector.broadcast %cst_8 : f32 to vector<128x512xf32>
    %13 = arith.maximumf %11, %12 : vector<128x512xf32>
    %cst_9 = arith.constant dense<0.000000e+00> : vector<8x512xf32>
    %14 = tpu.matmul %4, %13, %cst_9 {dimension_numbers = #tpu.dot_dimension_numbers<[1], [0], [0], [1], [0, 0, 1, 1], [], []>} : vector<8x128xf32>, vector<128x512xf32>, vector<8x512xf32> -> vector<8x512xf32>
    %15 = math.tanh %14 : vector<8x512xf32>
    %c0_10 = arith.constant 0 : index
    %c0_11 = arith.constant 0 : index
    %16 = vector.load %arg3[%c0_10, %c0_11] : memref<8x512xf32, #tpu.memory_space<vmem>>, vector<8x512xf32>
    tpu.vector_store %arg3[%c0_10, %c0_11], %15 {strides = array<i32>} : memref<8x512xf32, #tpu.memory_space<vmem>>, vector<8x512xf32>,
    return
  }
  func.func @transform_0(%arg0: i32) -> (i32, i32) {
    %c0_i32 = arith.constant 0 : i32
    %c0_i32_0 = arith.constant 0 : i32
    return %arg0, %c0_i32 : i32, i32
  }
  func.func @transform_1(%arg0: i32) -> (i32, i32) {
    %c0_i32 = arith.constant 0 : i32
    %c0_i32_0 = arith.constant 0 : i32
    %c0_i32_1 = arith.constant 0 : i32
    return %c0_i32, %c0_i32_0 : i32, i32
  }
  func.func @transform_2(%arg0: i32) -> (i32, i32) {
    %c0_i32 = arith.constant 0 : i32
    %c0_i32_0 = arith.constant 0 : i32
    return %c0_i32, %arg0 : i32, i32
  }
}

</mosaic_0001>

<llo_original>
// kernel: _bnn_apply.1
$region0: #{_bnn_apply.1}
  #allocation0 [shape = 'u32[]', space=smem, size = 0x4, offset = 0x4, fixed_abs, tag = 'smem constant byte address 0x4 - core index']
  #allocation1 [shape = 'u32[144,128]{1,0:T(1,128)}', space=vmem, size = 0x12000, scoped, tag = 'internal scratch']
  %s0 = inlined_call_operand.vmem [shape: f32[512,16], index: 0, kind: input, shape index: {}]
  %s1 = inlined_call_operand.vmem [shape: f32[160,128], index: 1, kind: input, shape index: {}]
  %s2 = inlined_call_operand.vmem [shape: f32[8,512], index: 2, kind: output, shape index: {}]
  %s3 = sld [smem:[#allocation0]]
  $region18: #{_bnn_apply.1} parent=0
    _
  %s5 = ssub.s32 1, %s3
  %s6 = scalar_select 0, %s5, %s3
  // Predicated region
  $region2: #{_bnn_apply.1} parent=0 // pred_check
    _
  $region3: #{_bnn_apply.1} parent=0 // pred_check_branch
    %8 = sbr.rel (0) target = $region5
  $region4: #{_bnn_apply.1} parent=0 // pred_region
    _
  $region5: #{_bnn_apply.1} parent=0 // pred_fallthru
    _
  // Predicated region
  $region6: #{_bnn_apply.1} parent=0 // pred_check
    _
  $region7: #{_bnn_apply.1} parent=0 // pred_check_branch
    %10 = sbr.rel (0) target = $region9
  $region8: #{_bnn_apply.1} parent=0 // pred_region
    _
  $region9: #{_bnn_apply.1} parent=0 // pred_fallthru
    _
  %v11 = vld [vmem:[%s0] sm:$0xff]
  %v12 = vld [vmem:[%s0 + $0x8] sm:$0xff]
  %v13 = vld [vmem:[%s0 + $0x10] sm:$0xff]
  %v14 = vld [vmem:[%s0 + $0x18] sm:$0xff]
  %v15 = vld [vmem:[%s0 + $0x20] sm:$0xff]
  %v16 = vld [vmem:[%s0 + $0x28] sm:$0xff]
  %v17 = vld [vmem:[%s0 + $0x30] sm:$0xff]
  %v18 = vld [vmem:[%s0 + $0x38] sm:$0xff]
  %v19 = vld [vmem:[%s0 + $0x40] sm:$0xff]
  %v20 = vld [vmem:[%s0 + $0x48] sm:$0xff]
  %v21 = vld [vmem:[%s0 + $0x50] sm:$0xff]
  %v22 = vld [vmem:[%s0 + $0x58] sm:$0xff]
  %v23 = vld [vmem:[%s0 + $0x60] sm:$0xff]
  %v24 = vld [vmem:[%s0 + $0x68] sm:$0xff]
  %v25 = vld [vmem:[%s0 + $0x70] sm:$0xff]
  %v26 = vld [vmem:[%s0 + $0x78] sm:$0xff]
  %v27 = vld [vmem:[%s0 + $0x80] sm:$0xff]
  %v28 = vld [vmem:[%s0 + $0x88] sm:$0xff]
  %v29 = vld [vmem:[%s0 + $0x90] sm:$0xff]
  %v30 = vld [vmem:[%s0 + $0x98] sm:$0xff]
  %v31 = vld [vmem:[%s0 + $0xa0] sm:$0xff]
  %v32 = vld [vmem:[%s0 + $0xa8] sm:$0xff]
  %v33 = vld [vmem:[%s0 + $0xb0] sm:$0xff]
  %v34 = vld [vmem:[%s0 + $0xb8] sm:$0xff]
  %v35 = vld [vmem:[%s0 + $0xc0] sm:$0xff]
  %v36 = vld [vmem:[%s0 + $0xc8] sm:$0xff]
  %v37 = vld [vmem:[%s0 + $0xd0] sm:$0xff]
  %v38 = vld [vmem:[%s0 + $0xd8] sm:$0xff]
  %v39 = vld [vmem:[%s0 + $0xe0] sm:$0xff]
  %v40 = vld [vmem:[%s0 + $0xe8] sm:$0xff]
  %v41 = vld [vmem:[%s0 + $0xf0] sm:$0xff]
  %v42 = vld [vmem:[%s0 + $0xf8] sm:$0xff]
  %v43 = vld [vmem:[%s0 + $0x100] sm:$0xff]
  %v44 = vld [vmem:[%s0 + $0x108] sm:$0xff]
  %v45 = vld [vmem:[%s0 + $0x110] sm:$0xff]
  %v46 = vld [vmem:[%s0 + $0x118] sm:$0xff]
  %v47 = vld [vmem:[%s0 + $0x120] sm:$0xff]
  %v48 = vld [vmem:[%s0 + $0x128] sm:$0xff]
  %v49 = vld [vmem:[%s0 + $0x130] sm:$0xff]
  %v50 = vld [vmem:[%s0 + $0x138] sm:$0xff]
  %v51 = vld [vmem:[%s0 + $0x140] sm:$0xff]
  %v52 = vld [vmem:[%s0 + $0x148] sm:$0xff]
  %v53 = vld [vmem:[%s0 + $0x150] sm:$0xff]
  %v54 = vld [vmem:[%s0 + $0x158] sm:$0xff]
  %v55 = vld [vmem:[%s0 + $0x160] sm:$0xff]
  %v56 = vld [vmem:[%s0 + $0x168] sm:$0xff]
  %v57 = vld [vmem:[%s0 + $0x170] sm:$0xff]
  %v58 = vld [vmem:[%s0 + $0x178] sm:$0xff]
  %v59 = vld [vmem:[%s0 + $0x180] sm:$0xff]
  %v60 = vld [vmem:[%s0 + $0x188] sm:$0xff]
  %v61 = vld [vmem:[%s0 + $0x190] sm:$0xff]
  %v62 = vld [vmem:[%s0 + $0x198] sm:$0xff]
  %v63 = vld [vmem:[%s0 + $0x1a0] sm:$0xff]
  %v64 = vld [vmem:[%s0 + $0x1a8] sm:$0xff]
  %v65 = vld [vmem:[%s0 + $0x1b0] sm:$0xff]
  %v66 = vld [vmem:[%s0 + $0x1b8] sm:$0xff]
  %v67 = vld [vmem:[%s0 + $0x1c0] sm:$0xff]
  %v68 = vld [vmem:[%s0 + $0x1c8] sm:$0xff]
  %v69 = vld [vmem:[%s0 + $0x1d0] sm:$0xff]
  %v70 = vld [vmem:[%s0 + $0x1d8] sm:$0xff]
  %v71 = vld [vmem:[%s0 + $0x1e0] sm:$0xff]
  %v72 = vld [vmem:[%s0 + $0x1e8] sm:$0xff]
  %v73 = vld [vmem:[%s0 + $0x1f0] sm:$0xff]
  %v74 = vld [vmem:[%s0 + $0x1f8] sm:$0xff]
  %v75 = vld [vmem:[%s1] sm:$0xff]
  %v76 = vld [vmem:[%s1 + $0x8] sm:$0xff]
  %v77 = vld [vmem:[%s1 + $0x10] sm:$0x1]
  %v78 = vld [vmem:[%s1 + $0x18] sm:$0xff]
  %v79 = vld [vmem:[%s1 + $0x20] sm:$0xff]
  %v80 = vld [vmem:[%s1 + $0x28] sm:$0xff]
  %v81 = vld [vmem:[%s1 + $0x30] sm:$0xff]
  %v82 = vld [vmem:[%s1 + $0x38] sm:$0xff]
  %v83 = vld [vmem:[%s1 + $0x40] sm:$0xff]
  %v84 = vld [vmem:[%s1 + $0x48] sm:$0xff]
  %v85 = vld [vmem:[%s1 + $0x50] sm:$0xff]
  %v86 = vld [vmem:[%s1 + $0x58] sm:$0xff]
  %v87 = vld [vmem:[%s1 + $0x60] sm:$0xff]
  %v88 = vld [vmem:[%s1 + $0x68] sm:$0xff]
  %v89 = vld [vmem:[%s1 + $0x70] sm:$0xff]
  %v90 = vld [vmem:[%s1 + $0x78] sm:$0xff]
  %v91 = vld [vmem:[%s1 + $0x80] sm:$0xff]
  %v92 = vld [vmem:[%s1 + $0x88] sm:$0xff]
  %v93 = vld [vmem:[%s1 + $0x90] sm:$0xff]
  %v94 = vld [vmem:[%s1 + $0x98] sm:$0xff]
  %v95 = vlaneseq
  %v96 = vshrl.u32 %v95, 7
  %v97 = vsub.s32 0, %v96
  %v98 = vrot.slane %v77, %v97
  %vm99 = vcmask 130048
  %v101 = vsel %vm99, %v11, 0
  %v104 = vsel %vm99, %v12, 0
  %v107 = vsel %vm99, %v13, 0
  %v110 = vsel %vm99, %v14, 0
  %v113 = vsel %vm99, %v15, 0
  %v116 = vsel %vm99, %v16, 0
  %v119 = vsel %vm99, %v17, 0
  %v122 = vsel %vm99, %v18, 0
  %v125 = vsel %vm99, %v19, 0
  %v128 = vsel %vm99, %v20, 0
  %v131 = vsel %vm99, %v21, 0
  %v134 = vsel %vm99, %v22, 0
  %v137 = vsel %vm99, %v23, 0
  %v140 = vsel %vm99, %v24, 0
  %v143 = vsel %vm99, %v25, 0
  %v146 = vsel %vm99, %v26, 0
  %v149 = vsel %vm99, %v27, 0
  %v152 = vsel %vm99, %v28, 0
  %v155 = vsel %vm99, %v29, 0
  %v158 = vsel %vm99, %v30, 0
  %v161 = vsel %vm99, %v31, 0
  %v164 = vsel %vm99, %v32, 0
  %v167 = vsel %vm99, %v33, 0
  %v170 = vsel %vm99, %v34, 0
  %v173 = vsel %vm99, %v35, 0
  %v176 = vsel %vm99, %v36, 0
  %v179 = vsel %vm99, %v37, 0
  %v182 = vsel %vm99, %v38, 0
  %v185 = vsel %vm99, %v39, 0
  %v188 = vsel %vm99, %v40, 0
  %v191 = vsel %vm99, %v41, 0
  %v194 = vsel %vm99, %v42, 0
  %v197 = vsel %vm99, %v43, 0
  %v200 = vsel %vm99, %v44, 0
  %v203 = vsel %vm99, %v45, 0
  %v206 = vsel %vm99, %v46, 0
  %v209 = vsel %vm99, %v47, 0
  %v212 = vsel %vm99, %v48, 0
  %v215 = vsel %vm99, %v49, 0
  %v218 = vsel %vm99, %v50, 0
  %v221 = vsel %vm99, %v51, 0
  %v224 = vsel %vm99, %v52, 0
  %v227 = vsel %vm99, %v53, 0
  %v230 = vsel %vm99, %v54, 0
  %v233 = vsel %vm99, %v55, 0
  %v236 = vsel %vm99, %v56, 0
  %v239 = vsel %vm99, %v57, 0
  %v242 = vsel %vm99, %v58, 0
  %v245 = vsel %vm99, %v59, 0
  %v248 = vsel %vm99, %v60, 0
  %v251 = vsel %vm99, %v61, 0
  %v254 = vsel %vm99, %v62, 0
  %v257 = vsel %vm99, %v63, 0
  %v260 = vsel %vm99, %v64, 0
  %v263 = vsel %vm99, %v65, 0
  %v266 = vsel %vm99, %v66, 0
  %v269 = vsel %vm99, %v67, 0
  %v272 = vsel %vm99, %v68, 0
  %v275 = vsel %vm99, %v69, 0
  %v278 = vsel %vm99, %v70, 0
  %v281 = vsel %vm99, %v71, 0
  %v284 = vsel %vm99, %v72, 0
  %v287 = vsel %vm99, %v73, 0
  %v290 = vsel %vm99, %v74, 0
  %292 = vmatprep.subr.mxu0 0.0
  %293 = vmatpush1.msra.mxu0 %v75
  %294 = vmatprep.subr.mxu0 0.0
  %295 = vmatpush1.msra.mxu0 %v76
  %296 = vmatprep.subr.mxu0 0.0
  %297 = vmatpush1.msra.mxu0 0.0
  %298 = vmatprep.subr.mxu0 0.0
  %299 = vmatpush1.msra.mxu0 0.0
  %300 = vmatprep.subr.mxu0 0.0
  %301 = vmatpush1.msra.mxu0 0.0
  %302 = vmatprep.subr.mxu0 0.0
  %303 = vmatpush1.msra.mxu0 0.0
  %304 = vmatprep.subr.mxu0 0.0
  %305 = vmatpush1.msra.mxu0 0.0
  %306 = vmatprep.subr.mxu0 0.0
  %307 = vmatpush1.msra.mxu0 0.0
  %308 = vmatprep.subr.mxu0 0.0
  %309 = vmatpush1.msra.mxu0 0.0
  %310 = vmatprep.subr.mxu0 0.0
  %311 = vmatpush1.msra.mxu0 0.0
  %312 = vmatprep.subr.mxu0 0.0
  %313 = vmatpush1.msra.mxu0 0.0
  %314 = vmatprep.subr.mxu0 0.0
  %315 = vmatpush1.msra.mxu0 0.0
  %316 = vmatprep.subr.mxu0 0.0
  %317 = vmatpush1.msra.mxu0 0.0
  %318 = vmatprep.subr.mxu0 0.0
  %319 = vmatpush1.msra.mxu0 0.0
  %320 = vmatprep.subr.mxu0 0.0
  %321 = vmatpush1.msra.mxu0 0.0
  %322 = vmatprep.subr.mxu0 0.0
  %323 = vmatpush1.msra.mxu0 0.0
  %324 = vmatprep.subr.mxu0 0.0
  %325 = vmatpush1.msra.mxu0 0.0
  %326 = vmatprep.subr.mxu0 0.0
  %327 = vmatpush1.msra.mxu0 0.0
  %328 = vmatprep.subr.mxu0 0.0
  %329 = vmatpush1.msra.mxu0 0.0
  %330 = vmatprep.subr.mxu0 0.0
  %331 = vmatpush1.msra.mxu0 0.0
  %332 = vmatprep.subr.mxu0 0.0
  %333 = vmatpush1.msra.mxu0 0.0
  %334 = vmatprep.subr.mxu0 0.0
  %335 = vmatpush1.msra.mxu0 0.0
  %336 = vmatprep.subr.mxu0 0.0
  %337 = vmatpush1.msra.mxu0 0.0
  %338 = vmatprep.subr.mxu0 0.0
  %339 = vmatpush1.msra.mxu0 0.0
  %340 = vmatprep.subr.mxu0 0.0
  %341 = vmatpush1.msra.mxu0 0.0
  %342 = vmatprep.subr.mxu0 0.0
  %343 = vmatpush1.msra.mxu0 0.0
  %344 = vmatprep.subr.mxu0 0.0
  %345 = vmatpush1.msra.mxu0 0.0
  %346 = vmatprep.subr.mxu0 0.0
  %347 = vmatpush1.msra.mxu0 0.0
  %348 = vmatprep.subr.mxu0 0.0
  %349 = vmatpush1.msra.mxu0 0.0
  %350 = vmatprep.subr.mxu0 0.0
  %351 = vmatpush1.msra.mxu0 0.0
  %352 = vmatprep.subr.mxu0 0.0
  %353 = vmatpush1.msra.mxu0 0.0
  %354 = vmatprep.subr.mxu0 0.0
  %355 = vmatpush1.msra.mxu0 0.0
  %356 = vmatprep.mubr.f32.mxu0 0.0
  %357 = vmatmul.mubr.f32.gmra.mrb[0].mxu0 %v101
  %v358 = vpop.f32.mrb[0].mxu0
  %v359 = vadd.f32 %v98, %v358
  %v360 = vpop.f32.mrb[0].mxu0
  %361 = vmatprep.mubr.f32.mxu0 0.0
  %362 = vmatmul.mubr.f32.gmra.mrb[0].mxu0 %v104
  %v363 = vpop.f32.mrb[0].mxu0
  %v364 = vadd.f32 %v98, %v363
  %v365 = vpop.f32.mrb[0].mxu0
  %366 = vmatprep.mubr.f32.mxu0 0.0
  %367 = vmatmul.mubr.f32.gmra.mrb[0].mxu0 %v107
  %v368 = vpop.f32.mrb[0].mxu0
  %v369 = vadd.f32 %v98, %v368
  %v370 = vpop.f32.mrb[0].mxu0
  %371 = vmatprep.mubr.f32.mxu0 0.0
  %372 = vmatmul.mubr.f32.gmra.mrb[0].mxu0 %v110
  %v373 = vpop.f32.mrb[0].mxu0
  %v374 = vadd.f32 %v98, %v373
  %v375 = vpop.f32.mrb[0].mxu0
  %376 = vmatprep.mubr.f32.mxu0 0.0
  %377 = vmatmul.mubr.f32.gmra.mrb[0].mxu0 %v113
  %v378 = vpop.f32.mrb[0].mxu0
  %v379 = vadd.f32 %v98, %v378
  %v380 = vpop.f32.mrb[0].mxu0
  %381 = vmatprep.mubr.f32.mxu0 0.0
  %382 = vmatmul.mubr.f32.gmra.mrb[0].mxu0 %v116
  %v383 = vpop.f32.mrb[0].mxu0
  %v384 = vadd.f32 %v98, %v383
  %v385 = vpop.f32.mrb[0].mxu0
  %386 = vmatprep.mubr.f32.mxu0 0.0
  %387 = vmatmul.mubr.f32.gmra.mrb[0].mxu0 %v119
  %v388 = vpop.f32.mrb[0].mxu0
  %v389 = vadd.f32 %v98, %v388
  %v390 = vpop.f32.mrb[0].mxu0
  %391 = vmatprep.mubr.f32.mxu0 0.0
  %392 = vmatmul.mubr.f32.gmra.mrb[0].mxu0 %v122
  %v393 = vpop.f32.mrb[0].mxu0
  %v394 = vadd.f32 %v98, %v393
  %v395 = vpop.f32.mrb[0].mxu0
  %396 = vmatprep.mubr.f32.mxu0 0.0
  %397 = vmatmul.mubr.f32.gmra.mrb[0].mxu0 %v125
  %v398 = vpop.f32.mrb[0].mxu0
  %v399 = vadd.f32 %v98, %v398
  %v400 = vpop.f32.mrb[0].mxu0
  %401 = vmatprep.mubr.f32.mxu0 0.0
  %402 = vmatmul.mubr.f32.gmra.mrb[0].mxu0 %v128
  %v403 = vpop.f32.mrb[0].mxu0
  %v404 = vadd.f32 %v98, %v403
  %v405 = vpop.f32.mrb[0].mxu0
  %406 = vmatprep.mubr.f32.mxu0 0.0
  %407 = vmatmul.mubr.f32.gmra.mrb[0].mxu0 %v131
  %v408 = vpop.f32.mrb[0].mxu0
  %v409 = vadd.f32 %v98, %v408
  %v410 = vpop.f32.mrb[0].mxu0
  %411 = vmatprep.mubr.f32.mxu0 0.0
  %412 = vmatmul.mubr.f32.gmra.mrb[0].mxu0 %v134
  %v413 = vpop.f32.mrb[0].mxu0
  %v414 = vadd.f32 %v98, %v413
  %v415 = vpop.f32.mrb[0].mxu0
  %416 = vmatprep.mubr.f32.mxu0 0.0
  %417 = vmatmul.mubr.f32.gmra.mrb[0].mxu0 %v137
  %v418 = vpop.f32.mrb[0].mxu0
  %v419 = vadd.f32 %v98, %v418
  %v420 = vpop.f32.mrb[0].mxu0
  %421 = vmatprep.mubr.f32.mxu0 0.0
  %422 = vmatmul.mubr.f32.gmra.mrb[0].mxu0 %v140
  %v423 = vpop.f32.mrb[0].mxu0
  %v424 = vadd.f32 %v98, %v423
  %v425 = vpop.f32.mrb[0].mxu0
  %426 = vmatprep.mubr.f32.mxu0 0.0
  %427 = vmatmul.mubr.f32.gmra.mrb[0].mxu0 %v143
  %v428 = vpop.f32.mrb[0].mxu0
  %v429 = vadd.f32 %v98, %v428
  %v430 = vpop.f32.mrb[0].mxu0
  %431 = vmatprep.mubr.f32.mxu0 0.0
  %432 = vmatmul.mubr.f32.gmra.mrb[0].mxu0 %v146
  %v433 = vpop.f32.mrb[0].mxu0
  %v434 = vadd.f32 %v98, %v433
  %v435 = vpop.f32.mrb[0].mxu0
  %436 = vmatprep.mubr.f32.mxu0 0.0
  %437 = vmatmul.mubr.f32.gmra.mrb[0].mxu0 %v149
  %v438 = vpop.f32.mrb[0].mxu0
  %v439 = vadd.f32 %v98, %v438
  %v440 = vpop.f32.mrb[0].mxu0
  %441 = vmatprep.mubr.f32.mxu0 0.0
  %442 = vmatmul.mubr.f32.gmra.mrb[0].mxu0 %v152
  %v443 = vpop.f32.mrb[0].mxu0
  %v444 = vadd.f32 %v98, %v443
  %v445 = vpop.f32.mrb[0].mxu0
  %446 = vmatprep.mubr.f32.mxu0 0.0
  %447 = vmatmul.mubr.f32.gmra.mrb[0].mxu0 %v155
  %v448 = vpop.f32.mrb[0].mxu0
  %v449 = vadd.f32 %v98, %v448
  %v450 = vpop.f32.mrb[0].mxu0
  %451 = vmatprep.mubr.f32.mxu0 0.0
  %452 = vmatmul.mubr.f32.gmra.mrb[0].mxu0 %v158
  %v453 = vpop.f32.mrb[0].mxu0
  %v454 = vadd.f32 %v98, %v453
  %v455 = vpop.f32.mrb[0].mxu0
  %456 = vmatprep.mubr.f32.mxu0 0.0
  %457 = vmatmul.mubr.f32.gmra.mrb[0].mxu0 %v161
  %v458 = vpop.f32.mrb[0].mxu0
  %v459 = vadd.f32 %v98, %v458
  %v460 = vpop.f32.mrb[0].mxu0
  %461 = vmatprep.mubr.f32.mxu0 0.0
  %462 = vmatmul.mubr.f32.gmra.mrb[0].mxu0 %v164
  %v463 = vpop.f32.mrb[0].mxu0
  %v464 = vadd.f32 %v98, %v463
  %v465 = vpop.f32.mrb[0].mxu0
  %466 = vmatprep.mubr.f32.mxu0 0.0
  %467 = vmatmul.mubr.f32.gmra.mrb[0].mxu0 %v167
  %v468 = vpop.f32.mrb[0].mxu0
  %v469 = vadd.f32 %v98, %v468
  %v470 = vpop.f32.mrb[0].mxu0
  %471 = vmatprep.mubr.f32.mxu0 0.0
  %472 = vmatmul.mubr.f32.gmra.mrb[0].mxu0 %v170
  %v473 = vpop.f32.mrb[0].mxu0
  %v474 = vadd.f32 %v98, %v473
  %v475 = vpop.f32.mrb[0].mxu0
  %476 = vmatprep.mubr.f32.mxu0 0.0
  %477 = vmatmul.mubr.f32.gmra.mrb[0].mxu0 %v173
  %v478 = vpop.f32.mrb[0].mxu0
  %v479 = vadd.f32 %v98, %v478
  %v480 = vpop.f32.mrb[0].mxu0
  %481 = vmatprep.mubr.f32.mxu0 0.0
  %482 = vmatmul.mubr.f32.gmra.mrb[0].mxu0 %v176
  %v483 = vpop.f32.mrb[0].mxu0
  %v484 = vadd.f32 %v98, %v483
  %v485 = vpop.f32.mrb[0].mxu0
  %486 = vmatprep.mubr.f32.mxu0 0.0
  %487 = vmatmul.mubr.f32.gmra.mrb[0].mxu0 %v179
  %v488 = vpop.f32.mrb[0].mxu0
  %v489 = vadd.f32 %v98, %v488
  %v490 = vpop.f32.mrb[0].mxu0
  %491 = vmatprep.mubr.f32.mxu0 0.0
  %492 = vmatmul.mubr.f32.gmra.mrb[0].mxu0 %v182
  %v493 = vpop.f32.mrb[0].mxu0
  %v494 = vadd.f32 %v98, %v493
  %v495 = vpop.f32.mrb[0].mxu0
  %496 = vmatprep.mubr.f32.mxu0 0.0
  %497 = vmatmul.mubr.f32.gmra.mrb[0].mxu0 %v185
  %v498 = vpop.f32.mrb[0].mxu0
  %v499 = vadd.f32 %v98, %v498
  %v500 = vpop.f32.mrb[0].mxu0
  %501 = vmatprep.mubr.f32.mxu0 0.0
  %502 = vmatmul.mubr.f32.gmra.mrb[0].mxu0 %v188
  %v503 = vpop.f32.mrb[0].mxu0
  %v504 = vadd.f32 %v98, %v503
  %v505 = vpop.f32.mrb[0].mxu0
  %506 = vmatprep.mubr.f32.mxu0 0.0
  %507 = vmatmul.mubr.f32.gmra.mrb[0].mxu0 %v191
  %v508 = vpop.f32.mrb[0].mxu0
  %v509 = vadd.f32 %v98, %v508
  %v510 = vpop.f32.mrb[0].mxu0
  %511 = vmatprep.mubr.f32.mxu0 0.0
  %512 = vmatmul.mubr.f32.gmra.mrb[0].mxu0 %v194
  %v513 = vpop.f32.mrb[0].mxu0
  %v514 = vadd.f32 %v98, %v513
  %v515 = vpop.f32.mrb[0].mxu0
  %516 = vmatprep.mubr.f32.mxu0 0.0
  %517 = vmatmul.mubr.f32.gmra.mrb[0].mxu0 %v197
  %v518 = vpop.f32.mrb[0].mxu0
  %v519 = vadd.f32 %v98, %v518
  %v520 = vpop.f32.mrb[0].mxu0
  %521 = vmatprep.mubr.f32.mxu0 0.0
  %522 = vmatmul.mubr.f32.gmra.mrb[0].mxu0 %v200
  %v523 = vpop.f32.mrb[0].mxu0
  %v524 = vadd.f32 %v98, %v523
  %v525 = vpop.f32.mrb[0].mxu0
  %526 = vmatprep.mubr.f32.mxu0 0.0
  %527 = vmatmul.mubr.f32.gmra.mrb[0].mxu0 %v203
  %v528 = vpop.f32.mrb[0].mxu0
  %v529 = vadd.f32 %v98, %v528
  %v530 = vpop.f32.mrb[0].mxu0
  %531 = vmatprep.mubr.f32.mxu0 0.0
  %532 = vmatmul.mubr.f32.gmra.mrb[0].mxu0 %v206
  %v533 = vpop.f32.mrb[0].mxu0
  %v534 = vadd.f32 %v98, %v533
  %v535 = vpop.f32.mrb[0].mxu0
  %536 = vmatprep.mubr.f32.mxu0 0.0
  %537 = vmatmul.mubr.f32.gmra.mrb[0].mxu0 %v209
  %v538 = vpop.f32.mrb[0].mxu0
  %v539 = vadd.f32 %v98, %v538
  %v540 = vpop.f32.mrb[0].mxu0
  %541 = vmatprep.mubr.f32.mxu0 0.0
  %542 = vmatmul.mubr.f32.gmra.mrb[0].mxu0 %v212
  %v543 = vpop.f32.mrb[0].mxu0
  %v544 = vadd.f32 %v98, %v543
  %v545 = vpop.f32.mrb[0].mxu0
  %546 = vmatprep.mubr.f32.mxu0 0.0
  %547 = vmatmul.mubr.f32.gmra.mrb[0].mxu0 %v215
  %v548 = vpop.f32.mrb[0].mxu0
  %v549 = vadd.f32 %v98, %v548
  %v550 = vpop.f32.mrb[0].mxu0
  %551 = vmatprep.mubr.f32.mxu0 0.0
  %552 = vmatmul.mubr.f32.gmra.mrb[0].mxu0 %v218
  %v553 = vpop.f32.mrb[0].mxu0
  %v554 = vadd.f32 %v98, %v553
  %v555 = vpop.f32.mrb[0].mxu0
  %556 = vmatprep.mubr.f32.mxu0 0.0
  %557 = vmatmul.mubr.f32.gmra.mrb[0].mxu0 %v221
  %v558 = vpop.f32.mrb[0].mxu0
  %v559 = vadd.f32 %v98, %v558
  %v560 = vpop.f32.mrb[0].mxu0
  %561 = vmatprep.mubr.f32.mxu0 0.0
  %562 = vmatmul.mubr.f32.gmra.mrb[0].mxu0 %v224
  %v563 = vpop.f32.mrb[0].mxu0
  %v564 = vadd.f32 %v98, %v563
  %v565 = vpop.f32.mrb[0].mxu0
  %566 = vmatprep.mubr.f32.mxu0 0.0
  %567 = vmatmul.mubr.f32.gmra.mrb[0].mxu0 %v227
  %v568 = vpop.f32.mrb[0].mxu0
  %v569 = vadd.f32 %v98, %v568
  %v570 = vpop.f32.mrb[0].mxu0
  %571 = vmatprep.mubr.f32.mxu0 0.0
  %572 = vmatmul.mubr.f32.gmra.mrb[0].mxu0 %v230
  %v573 = vpop.f32.mrb[0].mxu0
  %v574 = vadd.f32 %v98, %v573
  %v575 = vpop.f32.mrb[0].mxu0
  %576 = vmatprep.mubr.f32.mxu0 0.0
  %577 = vmatmul.mubr.f32.gmra.mrb[0].mxu0 %v233
  %v578 = vpop.f32.mrb[0].mxu0
  %v579 = vadd.f32 %v98, %v578
  %v580 = vpop.f32.mrb[0].mxu0
  %581 = vmatprep.mubr.f32.mxu0 0.0
  %582 = vmatmul.mubr.f32.gmra.mrb[0].mxu0 %v236
  %v583 = vpop.f32.mrb[0].mxu0
  %v584 = vadd.f32 %v98, %v583
  %v585 = vpop.f32.mrb[0].mxu0
  %586 = vmatprep.mubr.f32.mxu0 0.0
  %587 = vmatmul.mubr.f32.gmra.mrb[0].mxu0 %v239
  %v588 = vpop.f32.mrb[0].mxu0
  %v589 = vadd.f32 %v98, %v588
  %v590 = vpop.f32.mrb[0].mxu0
  %591 = vmatprep.mubr.f32.mxu0 0.0
  %592 = vmatmul.mubr.f32.gmra.mrb[0].mxu0 %v242
  %v593 = vpop.f32.mrb[0].mxu0
  %v594 = vadd.f32 %v98, %v593
  %v595 = vpop.f32.mrb[0].mxu0
  %596 = vmatprep.mubr.f32.mxu0 0.0
  %597 = vmatmul.mubr.f32.gmra.mrb[0].mxu0 %v245
  %v598 = vpop.f32.mrb[0].mxu0
  %v599 = vadd.f32 %v98, %v598
  %v600 = vpop.f32.mrb[0].mxu0
  %601 = vmatprep.mubr.f32.mxu0 0.0
  %602 = vmatmul.mubr.f32.gmra.mrb[0].mxu0 %v248
  %v603 = vpop.f32.mrb[0].mxu0
  %v604 = vadd.f32 %v98, %v603
  %v605 = vpop.f32.mrb[0].mxu0
  %606 = vmatprep.mubr.f32.mxu0 0.0
  %607 = vmatmul.mubr.f32.gmra.mrb[0].mxu0 %v251
  %v608 = vpop.f32.mrb[0].mxu0
  %v609 = vadd.f32 %v98, %v608
  %v610 = vpop.f32.mrb[0].mxu0
  %611 = vmatprep.mubr.f32.mxu0 0.0
  %612 = vmatmul.mubr.f32.gmra.mrb[0].mxu0 %v254
  %v613 = vpop.f32.mrb[0].mxu0
  %v614 = vadd.f32 %v98, %v613
  %v615 = vpop.f32.mrb[0].mxu0
  %616 = vmatprep.mubr.f32.mxu0 0.0
  %617 = vmatmul.mubr.f32.gmra.mrb[0].mxu0 %v257
  %v618 = vpop.f32.mrb[0].mxu0
  %v619 = vadd.f32 %v98, %v618
  %v620 = vpop.f32.mrb[0].mxu0
  %621 = vmatprep.mubr.f32.mxu0 0.0
  %622 = vmatmul.mubr.f32.gmra.mrb[0].mxu0 %v260
  %v623 = vpop.f32.mrb[0].mxu0
  %v624 = vadd.f32 %v98, %v623
  %v625 = vpop.f32.mrb[0].mxu0
  %626 = vmatprep.mubr.f32.mxu0 0.0
  %627 = vmatmul.mubr.f32.gmra.mrb[0].mxu0 %v263
  %v628 = vpop.f32.mrb[0].mxu0
  %v629 = vadd.f32 %v98, %v628
  %v630 = vpop.f32.mrb[0].mxu0
  %631 = vmatprep.mubr.f32.mxu0 0.0
  %632 = vmatmul.mubr.f32.gmra.mrb[0].mxu0 %v266
  %v633 = vpop.f32.mrb[0].mxu0
  %v634 = vadd.f32 %v98, %v633
  %v635 = vpop.f32.mrb[0].mxu0
  %636 = vmatprep.mubr.f32.mxu0 0.0
  %637 = vmatmul.mubr.f32.gmra.mrb[0].mxu0 %v269
  %v638 = vpop.f32.mrb[0].mxu0
  %v639 = vadd.f32 %v98, %v638
  %v640 = vpop.f32.mrb[0].mxu0
  %641 = vmatprep.mubr.f32.mxu0 0.0
  %642 = vmatmul.mubr.f32.gmra.mrb[0].mxu0 %v272
  %v643 = vpop.f32.mrb[0].mxu0
  %v644 = vadd.f32 %v98, %v643
  %v645 = vpop.f32.mrb[0].mxu0
  %646 = vmatprep.mubr.f32.mxu0 0.0
  %647 = vmatmul.mubr.f32.gmra.mrb[0].mxu0 %v275
  %v648 = vpop.f32.mrb[0].mxu0
  %v649 = vadd.f32 %v98, %v648
  %v650 = vpop.f32.mrb[0].mxu0
  %651 = vmatprep.mubr.f32.mxu0 0.0
  %652 = vmatmul.mubr.f32.gmra.mrb[0].mxu0 %v278
  %v653 = vpop.f32.mrb[0].mxu0
  %v654 = vadd.f32 %v98, %v653
  %v655 = vpop.f32.mrb[0].mxu0
  %656 = vmatprep.mubr.f32.mxu0 0.0
  %657 = vmatmul.mubr.f32.gmra.mrb[0].mxu0 %v281
  %v658 = vpop.f32.mrb[0].mxu0
  %v659 = vadd.f32 %v98, %v658
  %v660 = vpop.f32.mrb[0].mxu0
  %661 = vmatprep.mubr.f32.mxu0 0.0
  %662 = vmatmul.mubr.f32.gmra.mrb[0].mxu0 %v284
  %v663 = vpop.f32.mrb[0].mxu0
  %v664 = vadd.f32 %v98, %v663
  %v665 = vpop.f32.mrb[0].mxu0
  %666 = vmatprep.mubr.f32.mxu0 0.0
  %667 = vmatmul.mubr.f32.gmra.mrb[0].mxu0 %v287
  %v668 = vpop.f32.mrb[0].mxu0
  %v669 = vadd.f32 %v98, %v668
  %v670 = vpop.f32.mrb[0].mxu0
  %671 = vmatprep.mubr.f32.mxu0 0.0
  %672 = vmatmul.mubr.f32.gmra.mrb[0].mxu0 %v290
  %v673 = vpop.f32.mrb[0].mxu0
  %v674 = vadd.f32 %v98, %v673
  %v675 = vpop.f32.mrb[0].mxu0
  %676 = vdwg.mxu0
  %v677 = vmax.f32 %v359, 0.0
  %v678 = vmax.f32 %v364, 0.0
  %v679 = vmax.f32 %v369, 0.0
  %v680 = vmax.f32 %v374, 0.0
  %v681 = vmax.f32 %v379, 0.0
  %v682 = vmax.f32 %v384, 0.0
  %v683 = vmax.f32 %v389, 0.0
  %v684 = vmax.f32 %v394, 0.0
  %v685 = vmax.f32 %v399, 0.0
  %v686 = vmax.f32 %v404, 0.0
  %v687 = vmax.f32 %v409, 0.0
  %v688 = vmax.f32 %v414, 0.0
  %v689 = vmax.f32 %v419, 0.0
  %v690 = vmax.f32 %v424, 0.0
  %v691 = vmax.f32 %v429, 0.0
  %v692 = vmax.f32 %v434, 0.0
  %v693 = vmax.f32 %v439, 0.0
  %v694 = vmax.f32 %v444, 0.0
  %v695 = vmax.f32 %v449, 0.0
  %v696 = vmax.f32 %v454, 0.0
  %v697 = vmax.f32 %v459, 0.0
  %v698 = vmax.f32 %v464, 0.0
  %v699 = vmax.f32 %v469, 0.0
  %v700 = vmax.f32 %v474, 0.0
  %v701 = vmax.f32 %v479, 0.0
  %v702 = vmax.f32 %v484, 0.0
  %v703 = vmax.f32 %v489, 0.0
  %v704 = vmax.f32 %v494, 0.0
  %v705 = vmax.f32 %v499, 0.0
  %v706 = vmax.f32 %v504, 0.0
  %v707 = vmax.f32 %v509, 0.0
  %v708 = vmax.f32 %v514, 0.0
  %v709 = vmax.f32 %v519, 0.0
  %v710 = vmax.f32 %v524, 0.0
  %v711 = vmax.f32 %v529, 0.0
  %v712 = vmax.f32 %v534, 0.0
  %v713 = vmax.f32 %v539, 0.0
  %v714 = vmax.f32 %v544, 0.0
  %v715 = vmax.f32 %v549, 0.0
  %v716 = vmax.f32 %v554, 0.0
  %v717 = vmax.f32 %v559, 0.0
  %v718 = vmax.f32 %v564, 0.0
  %v719 = vmax.f32 %v569, 0.0
  %v720 = vmax.f32 %v574, 0.0
  %v721 = vmax.f32 %v579, 0.0
  %v722 = vmax.f32 %v584, 0.0
  %v723 = vmax.f32 %v589, 0.0
  %v724 = vmax.f32 %v594, 0.0
  %v725 = vmax.f32 %v599, 0.0
  %v726 = vmax.f32 %v604, 0.0
  %v727 = vmax.f32 %v609, 0.0
  %v728 = vmax.f32 %v614, 0.0
  %v729 = vmax.f32 %v619, 0.0
  %v730 = vmax.f32 %v624, 0.0
  %v731 = vmax.f32 %v629, 0.0
  %v732 = vmax.f32 %v634, 0.0
  %v733 = vmax.f32 %v639, 0.0
  %v734 = vmax.f32 %v644, 0.0
  %v735 = vmax.f32 %v649, 0.0
  %v736 = vmax.f32 %v654, 0.0
  %v737 = vmax.f32 %v659, 0.0
  %v738 = vmax.f32 %v664, 0.0
  %v739 = vmax.f32 %v669, 0.0
  %v740 = vmax.f32 %v674, 0.0
  %741 = vmatprep.subr.mxu0 0.0
  %742 = vmatpush1.xpose.msra.mxu0 %v677
  %743 = vmatprep.subr.mxu0 0.0
  %744 = vmatpush1.xpose.msra.mxu0 %v678
  %745 = vmatprep.subr.mxu0 0.0
  %746 = vmatpush1.xpose.msra.mxu0 %v679
  %747 = vmatprep.subr.mxu0 0.0
  %748 = vmatpush1.xpose.msra.mxu0 %v680
  %749 = vmatprep.subr.mxu0 0.0
  %750 = vmatpush1.xpose.msra.mxu0 %v681
  %751 = vmatprep.subr.mxu0 0.0
  %752 = vmatpush1.xpose.msra.mxu0 %v682
  %753 = vmatprep.subr.mxu0 0.0
  %754 = vmatpush1.xpose.msra.mxu0 %v683
  %755 = vmatprep.subr.mxu0 0.0
  %756 = vmatpush1.xpose.msra.mxu0 %v684
  %757 = vmatprep.subr.mxu0 0.0
  %758 = vmatpush1.xpose.msra.mxu0 %v685
  %759 = vmatprep.subr.mxu0 0.0
  %760 = vmatpush1.xpose.msra.mxu0 %v686
  %761 = vmatprep.subr.mxu0 0.0
  %762 = vmatpush1.xpose.msra.mxu0 %v687
  %763 = vmatprep.subr.mxu0 0.0
  %764 = vmatpush1.xpose.msra.mxu0 %v688
  %765 = vmatprep.subr.mxu0 0.0
  %766 = vmatpush1.xpose.msra.mxu0 %v689
  %767 = vmatprep.subr.mxu0 0.0
  %768 = vmatpush1.xpose.msra.mxu0 %v690
  %769 = vmatprep.subr.mxu0 0.0
  %770 = vmatpush1.xpose.msra.mxu0 %v691
  %771 = vmatprep.subr.mxu0 0.0
  %772 = vmatpush1.xpose.msra.mxu0 %v692
  %773 = vmatprep.subr.mxu0 0.0
  %774 = vmatpush1.xpose.msra.mxu0 %v693
  %775 = vmatprep.subr.mxu0 0.0
  %776 = vmatpush1.xpose.msra.mxu0 %v694
  %777 = vmatprep.subr.mxu0 0.0
  %778 = vmatpush1.xpose.msra.mxu0 %v695
  %779 = vmatprep.subr.mxu0 0.0
  %780 = vmatpush1.xpose.msra.mxu0 %v696
  %781 = vmatprep.subr.mxu0 0.0
  %782 = vmatpush1.xpose.msra.mxu0 %v697
  %783 = vmatprep.subr.mxu0 0.0
  %784 = vmatpush1.xpose.msra.mxu0 %v698
  %785 = vmatprep.subr.mxu0 0.0
  %786 = vmatpush1.xpose.msra.mxu0 %v699
  %787 = vmatprep.subr.mxu0 0.0
  %788 = vmatpush1.xpose.msra.mxu0 %v700
  %789 = vmatprep.subr.mxu0 0.0
  %790 = vmatpush1.xpose.msra.mxu0 %v701
  %791 = vmatprep.subr.mxu0 0.0
  %792 = vmatpush1.xpose.msra.mxu0 %v702
  %793 = vmatprep.subr.mxu0 0.0
  %794 = vmatpush1.xpose.msra.mxu0 %v703
  %795 = vmatprep.subr.mxu0 0.0
  %796 = vmatpush1.xpose.msra.mxu0 %v704
  %797 = vmatprep.subr.mxu0 0.0
  %798 = vmatpush1.xpose.msra.mxu0 %v705
  %799 = vmatprep.subr.mxu0 0.0
  %800 = vmatpush1.xpose.msra.mxu0 %v706
  %801 = vmatprep.subr.mxu0 0.0
  %802 = vmatpush1.xpose.msra.mxu0 %v707
  %803 = vmatprep.subr.mxu0 0.0
  %804 = vmatpush1.xpose.msra.mxu0 %v708
  %805 = vmatprep.mubr.f32.mxu0 0.0
  %806 = vmatmul.mubr.f32.gmra.mrb[0].mxu0 %v78
  %v807 = vpop.f32.mrb[0].mxu0
  %v808 = vadd.f32 0.0, %v807
  %v809 = vpop.f32.mrb[0].mxu0
  %v810 = vadd.f32 0.0, %v809
  %811 = vmatprep.mubr.f32.mxu0 0.0
  %812 = vmatmul.mubr.f32.gmra.mrb[0].mxu0 %v79
  %v813 = vpop.f32.mrb[0].mxu0
  %v814 = vadd.f32 0.0, %v813
  %v815 = vpop.f32.mrb[0].mxu0
  %v816 = vadd.f32 0.0, %v815
  %817 = vmatprep.mubr.f32.mxu0 0.0
  %818 = vmatmul.mubr.f32.gmra.mrb[0].mxu0 %v80
  %v819 = vpop.f32.mrb[0].mxu0
  %v820 = vadd.f32 0.0, %v819
  %v821 = vpop.f32.mrb[0].mxu0
  %v822 = vadd.f32 0.0, %v821
  %823 = vmatprep.mubr.f32.mxu0 0.0
  %824 = vmatmul.mubr.f32.gmra.mrb[0].mxu0 %v81
  %v825 = vpop.f32.mrb[0].mxu0
  %v826 = vadd.f32 0.0, %v825
  %v827 = vpop.f32.mrb[0].mxu0
  %v828 = vadd.f32 0.0, %v827
  %829 = vmatprep.mubr.f32.mxu0 0.0
  %830 = vmatmul.mubr.f32.gmra.mrb[0].mxu0 %v82
  %v831 = vpop.f32.mrb[0].mxu0
  %v832 = vadd.f32 0.0, %v831
  %v833 = vpop.f32.mrb[0].mxu0
  %v834 = vadd.f32 0.0, %v833
  %835 = vmatprep.mubr.f32.mxu0 0.0
  %836 = vmatmul.mubr.f32.gmra.mrb[0].mxu0 %v83
  %v837 = vpop.f32.mrb[0].mxu0
  %v838 = vadd.f32 0.0, %v837
  %v839 = vpop.f32.mrb[0].mxu0
  %v840 = vadd.f32 0.0, %v839
  %841 = vmatprep.mubr.f32.mxu0 0.0
  %842 = vmatmul.mubr.f32.gmra.mrb[0].mxu0 %v84
  %v843 = vpop.f32.mrb[0].mxu0
  %v844 = vadd.f32 0.0, %v843
  %v845 = vpop.f32.mrb[0].mxu0
  %v846 = vadd.f32 0.0, %v845
  %847 = vmatprep.mubr.f32.mxu0 0.0
  %848 = vmatmul.mubr.f32.gmra.mrb[0].mxu0 %v85
  %v849 = vpop.f32.mrb[0].mxu0
  %v850 = vadd.f32 0.0, %v849
  %v851 = vpop.f32.mrb[0].mxu0
  %v852 = vadd.f32 0.0, %v851
  %853 = vmatprep.mubr.f32.mxu0 0.0
  %854 = vmatmul.mubr.f32.gmra.mrb[0].mxu0 %v86
  %v855 = vpop.f32.mrb[0].mxu0
  %v856 = vadd.f32 0.0, %v855
  %v857 = vpop.f32.mrb[0].mxu0
  %v858 = vadd.f32 0.0, %v857
  %859 = vmatprep.mubr.f32.mxu0 0.0
  %860 = vmatmul.mubr.f32.gmra.mrb[0].mxu0 %v87
  %v861 = vpop.f32.mrb[0].mxu0
  %v862 = vadd.f32 0.0, %v861
  %v863 = vpop.f32.mrb[0].mxu0
  %v864 = vadd.f32 0.0, %v863
  %865 = vmatprep.mubr.f32.mxu0 0.0
  %866 = vmatmul.mubr.f32.gmra.mrb[0].mxu0 %v88
  %v867 = vpop.f32.mrb[0].mxu0
  %v868 = vadd.f32 0.0, %v867
  %v869 = vpop.f32.mrb[0].mxu0
  %v870 = vadd.f32 0.0, %v869
  %871 = vmatprep.mubr.f32.mxu0 0.0
  %872 = vmatmul.mubr.f32.gmra.mrb[0].mxu0 %v89
  %v873 = vpop.f32.mrb[0].mxu0
  %v874 = vadd.f32 0.0, %v873
  %v875 = vpop.f32.mrb[0].mxu0
  %v876 = vadd.f32 0.0, %v875
  %877 = vmatprep.mubr.f32.mxu0 0.0
  %878 = vmatmul.mubr.f32.gmra.mrb[0].mxu0 %v90
  %v879 = vpop.f32.mrb[0].mxu0
  %v880 = vadd.f32 0.0, %v879
  %v881 = vpop.f32.mrb[0].mxu0
  %v882 = vadd.f32 0.0, %v881
  %883 = vmatprep.mubr.f32.mxu0 0.0
  %884 = vmatmul.mubr.f32.gmra.mrb[0].mxu0 %v91
  %v885 = vpop.f32.mrb[0].mxu0
  %v886 = vadd.f32 0.0, %v885
  %v887 = vpop.f32.mrb[0].mxu0
  %v888 = vadd.f32 0.0, %v887
  %889 = vmatprep.mubr.f32.mxu0 0.0
  %890 = vmatmul.mubr.f32.gmra.mrb[0].mxu0 %v92
  %v891 = vpop.f32.mrb[0].mxu0
  %v892 = vadd.f32 0.0, %v891
  %v893 = vpop.f32.mrb[0].mxu0
  %v894 = vadd.f32 0.0, %v893
  %895 = vmatprep.mubr.f32.mxu0 0.0
  %896 = vmatmul.mubr.f32.gmra.mrb[0].mxu0 %v93
  %v897 = vpop.f32.mrb[0].mxu0
  %v898 = vadd.f32 0.0, %v897
  %v899 = vpop.f32.mrb[0].mxu0
  %v900 = vadd.f32 0.0, %v899
  %901 = vdwg.mxu0
  %902 = vmatprep.subr.mxu0 0.0
  %903 = vmatpush1.xpose.msra.mxu0 %v709
  %904 = vmatprep.subr.mxu0 0.0
  %905 = vmatpush1.xpose.msra.mxu0 %v710
  %906 = vmatprep.subr.mxu0 0.0
  %907 = vmatpush1.xpose.msra.mxu0 %v711
  %908 = vmatprep.subr.mxu0 0.0
  %909 = vmatpush1.xpose.msra.mxu0 %v712
  %910 = vmatprep.subr.mxu0 0.0
  %911 = vmatpush1.xpose.msra.mxu0 %v713
  %912 = vmatprep.subr.mxu0 0.0
  %913 = vmatpush1.xpose.msra.mxu0 %v714
  %914 = vmatprep.subr.mxu0 0.0
  %915 = vmatpush1.xpose.msra.mxu0 %v715
  %916 = vmatprep.subr.mxu0 0.0
  %917 = vmatpush1.xpose.msra.mxu0 %v716
  %918 = vmatprep.subr.mxu0 0.0
  %919 = vmatpush1.xpose.msra.mxu0 %v717
  %920 = vmatprep.subr.mxu0 0.0
  %921 = vmatpush1.xpose.msra.mxu0 %v718
  %922 = vmatprep.subr.mxu0 0.0
  %923 = vmatpush1.xpose.msra.mxu0 %v719
  %924 = vmatprep.subr.mxu0 0.0
  %925 = vmatpush1.xpose.msra.mxu0 %v720
  %926 = vmatprep.subr.mxu0 0.0
  %927 = vmatpush1.xpose.msra.mxu0 %v721
  %928 = vmatprep.subr.mxu0 0.0
  %929 = vmatpush1.xpose.msra.mxu0 %v722
  %930 = vmatprep.subr.mxu0 0.0
  %931 = vmatpush1.xpose.msra.mxu0 %v723
  %932 = vmatprep.subr.mxu0 0.0
  %933 = vmatpush1.xpose.msra.mxu0 %v724
  %934 = vmatprep.subr.mxu0 0.0
  %935 = vmatpush1.xpose.msra.mxu0 %v725
  %936 = vmatprep.subr.mxu0 0.0
  %937 = vmatpush1.xpose.msra.mxu0 %v726
  %938 = vmatprep.subr.mxu0 0.0
  %939 = vmatpush1.xpose.msra.mxu0 %v727
  %940 = vmatprep.subr.mxu0 0.0
  %941 = vmatpush1.xpose.msra.mxu0 %v728
  %942 = vmatprep.subr.mxu0 0.0
  %943 = vmatpush1.xpose.msra.mxu0 %v729
  %944 = vmatprep.subr.mxu0 0.0
  %945 = vmatpush1.xpose.msra.mxu0 %v730
  %946 = vmatprep.subr.mxu0 0.0
  %947 = vmatpush1.xpose.msra.mxu0 %v731
  %948 = vmatprep.subr.mxu0 0.0
  %949 = vmatpush1.xpose.msra.mxu0 %v732
  %950 = vmatprep.subr.mxu0 0.0
  %951 = vmatpush1.xpose.msra.mxu0 %v733
  %952 = vmatprep.subr.mxu0 0.0
  %953 = vmatpush1.xpose.msra.mxu0 %v734
  %954 = vmatprep.subr.mxu0 0.0
  %955 = vmatpush1.xpose.msra.mxu0 %v735
  %956 = vmatprep.subr.mxu0 0.0
  %957 = vmatpush1.xpose.msra.mxu0 %v736
  %958 = vmatprep.subr.mxu0 0.0
  %959 = vmatpush1.xpose.msra.mxu0 %v737
  %960 = vmatprep.subr.mxu0 0.0
  %961 = vmatpush1.xpose.msra.mxu0 %v738
  %962 = vmatprep.subr.mxu0 0.0
  %963 = vmatpush1.xpose.msra.mxu0 %v739
  %964 = vmatprep.subr.mxu0 0.0
  %965 = vmatpush1.xpose.msra.mxu0 %v740
  %966 = vmatprep.mubr.f32.mxu0 0.0
  %967 = vmatmul.mubr.f32.gmra.mrb[0].mxu0 %v78
  %v968 = vpop.f32.mrb[0].mxu0
  %v969 = vadd.f32 0.0, %v968
  %v970 = vpop.f32.mrb[0].mxu0
  %v971 = vadd.f32 0.0, %v970
  %972 = vmatprep.mubr.f32.mxu0 0.0
  %973 = vmatmul.mubr.f32.gmra.mrb[0].mxu0 %v79
  %v974 = vpop.f32.mrb[0].mxu0
  %v975 = vadd.f32 0.0, %v974
  %v976 = vpop.f32.mrb[0].mxu0
  %v977 = vadd.f32 0.0, %v976
  %978 = vmatprep.mubr.f32.mxu0 0.0
  %979 = vmatmul.mubr.f32.gmra.mrb[0].mxu0 %v80
  %v980 = vpop.f32.mrb[0].mxu0
  %v981 = vadd.f32 0.0, %v980
  %v982 = vpop.f32.mrb[0].mxu0
  %v983 = vadd.f32 0.0, %v982
  %984 = vmatprep.mubr.f32.mxu0 0.0
  %985 = vmatmul.mubr.f32.gmra.mrb[0].mxu0 %v81
  %v986 = vpop.f32.mrb[0].mxu0
  %v987 = vadd.f32 0.0, %v986
  %v988 = vpop.f32.mrb[0].mxu0
  %v989 = vadd.f32 0.0, %v988
  %990 = vmatprep.mubr.f32.mxu0 0.0
  %991 = vmatmul.mubr.f32.gmra.mrb[0].mxu0 %v82
  %v992 = vpop.f32.mrb[0].mxu0
  %v993 = vadd.f32 0.0, %v992
  %v994 = vpop.f32.mrb[0].mxu0
  %v995 = vadd.f32 0.0, %v994
  %996 = vmatprep.mubr.f32.mxu0 0.0
  %997 = vmatmul.mubr.f32.gmra.mrb[0].mxu0 %v83
  %v998 = vpop.f32.mrb[0].mxu0
  %v999 = vadd.f32 0.0, %v998
  %v1000 = vpop.f32.mrb[0].mxu0
  %v1001 = vadd.f32 0.0, %v1000
  %1002 = vmatprep.mubr.f32.mxu0 0.0
  %1003 = vmatmul.mubr.f32.gmra.mrb[0].mxu0 %v84
  %v1004 = vpop.f32.mrb[0].mxu0
  %v1005 = vadd.f32 0.0, %v1004
  %v1006 = vpop.f32.mrb[0].mxu0
  %v1007 = vadd.f32 0.0, %v1006
  %1008 = vmatprep.mubr.f32.mxu0 0.0
  %1009 = vmatmul.mubr.f32.gmra.mrb[0].mxu0 %v85
  %v1010 = vpop.f32.mrb[0].mxu0
  %v1011 = vadd.f32 0.0, %v1010
  %v1012 = vpop.f32.mrb[0].mxu0
  %v1013 = vadd.f32 0.0, %v1012
  %1014 = vmatprep.mubr.f32.mxu0 0.0
  %1015 = vmatmul.mubr.f32.gmra.mrb[0].mxu0 %v86
  %v1016 = vpop.f32.mrb[0].mxu0
  %v1017 = vadd.f32 0.0, %v1016
  %v1018 = vpop.f32.mrb[0].mxu0
  %v1019 = vadd.f32 0.0, %v1018
  %1020 = vmatprep.mubr.f32.mxu0 0.0
  %1021 = vmatmul.mubr.f32.gmra.mrb[0].mxu0 %v87
  %v1022 = vpop.f32.mrb[0].mxu0
  %v1023 = vadd.f32 0.0, %v1022
  %v1024 = vpop.f32.mrb[0].mxu0
  %v1025 = vadd.f32 0.0, %v1024
  %1026 = vmatprep.mubr.f32.mxu0 0.0
  %1027 = vmatmul.mubr.f32.gmra.mrb[0].mxu0 %v88
  %v1028 = vpop.f32.mrb[0].mxu0
  %v1029 = vadd.f32 0.0, %v1028
  %v1030 = vpop.f32.mrb[0].mxu0
  %v1031 = vadd.f32 0.0, %v1030
  %1032 = vmatprep.mubr.f32.mxu0 0.0
  %1033 = vmatmul.mubr.f32.gmra.mrb[0].mxu0 %v89
  %v1034 = vpop.f32.mrb[0].mxu0
  %v1035 = vadd.f32 0.0, %v1034
  %v1036 = vpop.f32.mrb[0].mxu0
  %v1037 = vadd.f32 0.0, %v1036
  %1038 = vmatprep.mubr.f32.mxu0 0.0
  %1039 = vmatmul.mubr.f32.gmra.mrb[0].mxu0 %v90
  %v1040 = vpop.f32.mrb[0].mxu0
  %v1041 = vadd.f32 0.0, %v1040
  %v1042 = vpop.f32.mrb[0].mxu0
  %v1043 = vadd.f32 0.0, %v1042
  %1044 = vmatprep.mubr.f32.mxu0 0.0
  %1045 = vmatmul.mubr.f32.gmra.mrb[0].mxu0 %v91
  %v1046 = vpop.f32.mrb[0].mxu0
  %v1047 = vadd.f32 0.0, %v1046
  %v1048 = vpop.f32.mrb[0].mxu0
  %v1049 = vadd.f32 0.0, %v1048
  %1050 = vmatprep.mubr.f32.mxu0 0.0
  %1051 = vmatmul.mubr.f32.gmra.mrb[0].mxu0 %v92
  %v1052 = vpop.f32.mrb[0].mxu0
  %v1053 = vadd.f32 0.0, %v1052
  %v1054 = vpop.f32.mrb[0].mxu0
  %v1055 = vadd.f32 0.0, %v1054
  %1056 = vmatprep.mubr.f32.mxu0 0.0
  %1057 = vmatmul.mubr.f32.gmra.mrb[0].mxu0 %v93
  %v1058 = vpop.f32.mrb[0].mxu0
  %v1059 = vadd.f32 0.0, %v1058
  %v1060 = vpop.f32.mrb[0].mxu0
  %v1061 = vadd.f32 0.0, %v1060
  %1062 = vdwg.mxu0
  %v1063 = vmax.f32 %v808, 0.0
  %v1064 = vmax.f32 %v810, 0.0
  %v1065 = vmax.f32 %v969, 0.0
  %v1066 = vmax.f32 %v971, 0.0
  %v1067 = vmax.f32 %v814, 0.0
  %v1068 = vmax.f32 %v816, 0.0
  %v1069 = vmax.f32 %v975, 0.0
  %v1070 = vmax.f32 %v977, 0.0
  %v1071 = vmax.f32 %v820, 0.0
  %v1072 = vmax.f32 %v822, 0.0
  %v1073 = vmax.f32 %v981, 0.0
  %v1074 = vmax.f32 %v983, 0.0
  %v1075 = vmax.f32 %v826, 0.0
  %v1076 = vmax.f32 %v828, 0.0
  %v1077 = vmax.f32 %v987, 0.0
  %v1078 = vmax.f32 %v989, 0.0
  %v1079 = vmax.f32 %v832, 0.0
  %v1080 = vmax.f32 %v834, 0.0
  %v1081 = vmax.f32 %v993, 0.0
  %v1082 = vmax.f32 %v995, 0.0
  %v1083 = vmax.f32 %v838, 0.0
  %v1084 = vmax.f32 %v840, 0.0
  %v1085 = vmax.f32 %v999, 0.0
  %v1086 = vmax.f32 %v1001, 0.0
  %v1087 = vmax.f32 %v844, 0.0
  %v1088 = vmax.f32 %v846, 0.0
  %v1089 = vmax.f32 %v1005, 0.0
  %v1090 = vmax.f32 %v1007, 0.0
  %v1091 = vmax.f32 %v850, 0.0
  %v1092 = vmax.f32 %v852, 0.0
  %v1093 = vmax.f32 %v1011, 0.0
  %v1094 = vmax.f32 %v1013, 0.0
  %v1095 = vmax.f32 %v856, 0.0
  %v1096 = vmax.f32 %v858, 0.0
  %v1097 = vmax.f32 %v1017, 0.0
  %v1098 = vmax.f32 %v1019, 0.0
  %v1099 = vmax.f32 %v862, 0.0
  %v1100 = vmax.f32 %v864, 0.0
  %v1101 = vmax.f32 %v1023, 0.0
  %v1102 = vmax.f32 %v1025, 0.0
  %v1103 = vmax.f32 %v868, 0.0
  %v1104 = vmax.f32 %v870, 0.0
  %v1105 = vmax.f32 %v1029, 0.0
  %v1106 = vmax.f32 %v1031, 0.0
  %v1107 = vmax.f32 %v874, 0.0
  %v1108 = vmax.f32 %v876, 0.0
  %v1109 = vmax.f32 %v1035, 0.0
  %v1110 = vmax.f32 %v1037, 0.0
  %v1111 = vmax.f32 %v880, 0.0
  %v1112 = vmax.f32 %v882, 0.0
  %v1113 = vmax.f32 %v1041, 0.0
  %v1114 = vmax.f32 %v1043, 0.0
  %v1115 = vmax.f32 %v886, 0.0
  %v1116 = vmax.f32 %v888, 0.0
  %v1117 = vmax.f32 %v1047, 0.0
  %v1118 = vmax.f32 %v1049, 0.0
  %v1119 = vmax.f32 %v892, 0.0
  %v1120 = vmax.f32 %v894, 0.0
  %v1121 = vmax.f32 %v1053, 0.0
  %v1122 = vmax.f32 %v1055, 0.0
  %v1123 = vmax.f32 %v898, 0.0
  %v1124 = vmax.f32 %v900, 0.0
  %v1125 = vmax.f32 %v1059, 0.0
  %v1126 = vmax.f32 %v1061, 0.0
  %1127 = vmatprep.subr.mxu0 %v1064
  %1128 = vmatpush1.msra.mxu0 %v1063
  %1129 = vmatprep.subr.mxu0 %v1068
  %1130 = vmatpush1.msra.mxu0 %v1067
  %1131 = vmatprep.subr.mxu0 %v1072
  %1132 = vmatpush1.msra.mxu0 %v1071
  %1133 = vmatprep.subr.mxu0 %v1076
  %1134 = vmatpush1.msra.mxu0 %v1075
  %1135 = vmatprep.subr.mxu0 %v1080
  %1136 = vmatpush1.msra.mxu0 %v1079
  %1137 = vmatprep.subr.mxu0 %v1084
  %1138 = vmatpush1.msra.mxu0 %v1083
  %1139 = vmatprep.subr.mxu0 %v1088
  %1140 = vmatpush1.msra.mxu0 %v1087
  %1141 = vmatprep.subr.mxu0 %v1092
  %1142 = vmatpush1.msra.mxu0 %v1091
  %1143 = vmatprep.subr.mxu0 %v1096
  %1144 = vmatpush1.msra.mxu0 %v1095
  %1145 = vmatprep.subr.mxu0 %v1100
  %1146 = vmatpush1.msra.mxu0 %v1099
  %1147 = vmatprep.subr.mxu0 %v1104
  %1148 = vmatpush1.msra.mxu0 %v1103
  %1149 = vmatprep.subr.mxu0 %v1108
  %1150 = vmatpush1.msra.mxu0 %v1107
  %1151 = vmatprep.subr.mxu0 %v1112
  %1152 = vmatpush1.msra.mxu0 %v1111
  %1153 = vmatprep.subr.mxu0 %v1116
  %1154 = vmatpush1.msra.mxu0 %v1115
  %1155 = vmatprep.subr.mxu0 %v1120
  %1156 = vmatpush1.msra.mxu0 %v1119
  %1157 = vmatprep.subr.mxu0 %v1124
  %1158 = vmatpush1.msra.mxu0 %v1123
  %1159 = vmatprep.subr.mxu0 0.0
  %1160 = vmatpush1.msra.mxu0 0.0
  %1161 = vmatprep.subr.mxu0 0.0
  %1162 = vmatpush1.msra.mxu0 0.0
  %1163 = vmatprep.subr.mxu0 0.0
  %1164 = vmatpush1.msra.mxu0 0.0
  %1165 = vmatprep.subr.mxu0 0.0
  %1166 = vmatpush1.msra.mxu0 0.0
  %1167 = vmatprep.subr.mxu0 0.0
  %1168 = vmatpush1.msra.mxu0 0.0
  %1169 = vmatprep.subr.mxu0 0.0
  %1170 = vmatpush1.msra.mxu0 0.0
  %1171 = vmatprep.subr.mxu0 0.0
  %1172 = vmatpush1.msra.mxu0 0.0
  %1173 = vmatprep.subr.mxu0 0.0
  %1174 = vmatpush1.msra.mxu0 0.0
  %1175 = vmatprep.subr.mxu0 0.0
  %1176 = vmatpush1.msra.mxu0 0.0
  %1177 = vmatprep.subr.mxu0 0.0
  %1178 = vmatpush1.msra.mxu0 0.0
  %1179 = vmatprep.subr.mxu0 0.0
  %1180 = vmatpush1.msra.mxu0 0.0
  %1181 = vmatprep.subr.mxu0 0.0
  %1182 = vmatpush1.msra.mxu0 0.0
  %1183 = vmatprep.subr.mxu0 0.0
  %1184 = vmatpush1.msra.mxu0 0.0
  %1185 = vmatprep.subr.mxu0 0.0
  %1186 = vmatpush1.msra.mxu0 0.0
  %1187 = vmatprep.subr.mxu0 0.0
  %1188 = vmatpush1.msra.mxu0 0.0
  %1189 = vmatprep.subr.mxu0 0.0
  %1190 = vmatpush1.msra.mxu0 0.0
  %1191 = vmatprep.mubr.f32.mxu0 0.0
  %1192 = vmatmul.mubr.f32.gmra.mrb[0].mxu0 %v94
  %v1193 = vpop.f32.mrb[0].mxu0
  %v1194 = vadd.f32 0.0, %v1193
  %v1195 = vpop.f32.mrb[0].mxu0
  %v1196 = vadd.f32 0.0, %v1195
  %1197 = vdwg.mxu0
  %1198 = vmatprep.subr.mxu0 %v1066
  %1199 = vmatpush1.msra.mxu0 %v1065
  %1200 = vmatprep.subr.mxu0 %v1070
  %1201 = vmatpush1.msra.mxu0 %v1069
  %1202 = vmatprep.subr.mxu0 %v1074
  %1203 = vmatpush1.msra.mxu0 %v1073
  %1204 = vmatprep.subr.mxu0 %v1078
  %1205 = vmatpush1.msra.mxu0 %v1077
  %1206 = vmatprep.subr.mxu0 %v1082
  %1207 = vmatpush1.msra.mxu0 %v1081
  %1208 = vmatprep.subr.mxu0 %v1086
  %1209 = vmatpush1.msra.mxu0 %v1085
  %1210 = vmatprep.subr.mxu0 %v1090
  %1211 = vmatpush1.msra.mxu0 %v1089
  %1212 = vmatprep.subr.mxu0 %v1094
  %1213 = vmatpush1.msra.mxu0 %v1093
  %1214 = vmatprep.subr.mxu0 %v1098
  %1215 = vmatpush1.msra.mxu0 %v1097
  %1216 = vmatprep.subr.mxu0 %v1102
  %1217 = vmatpush1.msra.mxu0 %v1101
  %1218 = vmatprep.subr.mxu0 %v1106
  %1219 = vmatpush1.msra.mxu0 %v1105
  %1220 = vmatprep.subr.mxu0 %v1110
  %1221 = vmatpush1.msra.mxu0 %v1109
  %1222 = vmatprep.subr.mxu0 %v1114
  %1223 = vmatpush1.msra.mxu0 %v1113
  %1224 = vmatprep.subr.mxu0 %v1118
  %1225 = vmatpush1.msra.mxu0 %v1117
  %1226 = vmatprep.subr.mxu0 %v1122
  %1227 = vmatpush1.msra.mxu0 %v1121
  %1228 = vmatprep.subr.mxu0 %v1126
  %1229 = vmatpush1.msra.mxu0 %v1125
  %1230 = vmatprep.subr.mxu0 0.0
  %1231 = vmatpush1.msra.mxu0 0.0
  %1232 = vmatprep.subr.mxu0 0.0
  %1233 = vmatpush1.msra.mxu0 0.0
  %1234 = vmatprep.subr.mxu0 0.0
  %1235 = vmatpush1.msra.mxu0 0.0
  %1236 = vmatprep.subr.mxu0 0.0
  %1237 = vmatpush1.msra.mxu0 0.0
  %1238 = vmatprep.subr.mxu0 0.0
  %1239 = vmatpush1.msra.mxu0 0.0
  %1240 = vmatprep.subr.mxu0 0.0
  %1241 = vmatpush1.msra.mxu0 0.0
  %1242 = vmatprep.subr.mxu0 0.0
  %1243 = vmatpush1.msra.mxu0 0.0
  %1244 = vmatprep.subr.mxu0 0.0
  %1245 = vmatpush1.msra.mxu0 0.0
  %1246 = vmatprep.subr.mxu0 0.0
  %1247 = vmatpush1.msra.mxu0 0.0
  %1248 = vmatprep.subr.mxu0 0.0
  %1249 = vmatpush1.msra.mxu0 0.0
  %1250 = vmatprep.subr.mxu0 0.0
  %1251 = vmatpush1.msra.mxu0 0.0
  %1252 = vmatprep.subr.mxu0 0.0
  %1253 = vmatpush1.msra.mxu0 0.0
  %1254 = vmatprep.subr.mxu0 0.0
  %1255 = vmatpush1.msra.mxu0 0.0
  %1256 = vmatprep.subr.mxu0 0.0
  %1257 = vmatpush1.msra.mxu0 0.0
  %1258 = vmatprep.subr.mxu0 0.0
  %1259 = vmatpush1.msra.mxu0 0.0
  %1260 = vmatprep.subr.mxu0 0.0
  %1261 = vmatpush1.msra.mxu0 0.0
  %1262 = vmatprep.mubr.f32.mxu0 0.0
  %1263 = vmatmul.mubr.f32.gmra.mrb[0].mxu0 %v94
  %v1264 = vpop.f32.mrb[0].mxu0
  %v1265 = vadd.f32 0.0, %v1264
  %v1266 = vpop.f32.mrb[0].mxu0
  %v1267 = vadd.f32 0.0, %v1266
  %1268 = vdwg.mxu0
  %v1269 = vtanh.pop %v1194
  %v1270 = vtanh.pop %v1196
  %v1271 = vtanh.pop %v1265
  %v1272 = vtanh.pop %v1267
  %1273 = vst [vmem:[%s2] sm:$0xff] %v1269
  %1274 = vst [vmem:[%s2 + $0x8] sm:$0xff] %v1270
  %1275 = vst [vmem:[%s2 + $0x10] sm:$0xff] %v1271
  %1276 = vst [vmem:[%s2 + $0x18] sm:$0xff] %v1272
  // Predicated region
  $region10: #{_bnn_apply.1} parent=0 // pred_check
    _
  $region11: #{_bnn_apply.1} parent=0 // pred_check_branch
    %1278 = sbr.rel (0) target = $region13
  $region12: #{_bnn_apply.1} parent=0 // pred_region
    _
  $region13: #{_bnn_apply.1} parent=0 // pred_fallthru
    _
  // Predicated region
  $region14: #{_bnn_apply.1} parent=0 // pred_check
    _
  $region15: #{_bnn_apply.1} parent=0 // pred_check_branch
    %1280 = sbr.rel (0) target = $region17
  $region16: #{_bnn_apply.1} parent=0 // pred_region
    _
  $region17: #{_bnn_apply.1} parent=0 // pred_fallthru
    _

</llo_original>
